<compile_context>
chip_gen: v7x
topology: tpu7x:2x2x1
jax: 0.10.0
libtpu: 0.0.40
codegen_flags: <defaults>
</compile_context>

<pallas_src>
import jax
import jax.numpy as jnp
from jax.experimental import pallas as pl
from jax.experimental.pallas import tpu as pltpu


def _round_up(x, m):
    return (x + m - 1) // m * m


def value_net_kernel(x_ref, w1_ref, b1w2_ref, b2_ref, o_ref):
    # x arrives as f32 straight from HBM; cast to bf16 in-kernel so fc1 runs on
    # the native bf16 MXU path (no wrapper-side cast/pad materialization).
    x_bf = x_ref[...].astype(jnp.bfloat16)                           # [TB, D_in]

    # fc1 (transposed): h[H, TB] = W1[H, D_in] @ x[TB, D_in]^T, f32 accumulate.
    h = jax.lax.dot_general(
        w1_ref[...], x_bf,
        dimension_numbers=(((1,), (1,)), ((), ())),
        preferred_element_type=jnp.float32,
    )

    # b1 / w2 are packed into one resident (H, 2) f32 block (single DMA).
    bw = b1w2_ref[...]                                               # [H, 2]
    b1 = bw[:, 0:1]                                                  # [H, 1]
    w2 = bw[:, 1:2]                                                  # [H, 1]

    # Bias + ReLU in f32 on the VPU (v5e-safe: no bf16 VPU path there).
    h = jnp.maximum(h + b1, 0.0)

    # TODO(synk): nn.Dropout(p=0.1) is eval-mode identity here; training-mode
    # masking would need pltpu.prng_seed / pltpu.prng_random_bits + 1/(1-p).

    # fc2 (out_features == 1): VPU multiply + sublane reduce, no N=1 matmul.
    v = jnp.sum(h * w2, axis=0, keepdims=True)                       # [1, TB]
    o_ref[...] = v + b2_ref[0, 0]                                    # lane-dense store


def prepare_params(w1, b1, w2, b2):
    """One-time parameter prep (call once; do NOT redo per forward)."""
    H, _ = w1.shape
    w1_bf = jnp.asarray(w1, jnp.bfloat16)                            # [H, D_in]
    b1w2 = jnp.stack(
        [jnp.asarray(b1, jnp.float32).reshape(H),
         jnp.asarray(w2, jnp.float32).reshape(H)], axis=1)           # [H, 2]
    b2_sc = jnp.asarray(b2, jnp.float32).reshape(1, 1)               # [1, 1]
    return w1_bf, b1w2, b2_sc


def _pick_batch_tile(B, max_batch_tile):
    if B <= 512:
        # Single tile; block dims equal the full array dims, so the (8,128)
        # constraint is satisfied for any B.
        return B
    # >= 2 parallel grid steps so v7x's two TensorCores both get work; tiles
    # are multiples of 128 so every (1, TB) output block is lane-aligned.
    return min(max_batch_tile, _round_up(pl.cdiv(B, 2), 128))


def value_network_forward(x, params, *, max_batch_tile=2048):
    """ValueNetwork forward.

    x:      [B, D_in] float32
    params: output of prepare_params(fc1.weight, fc1.bias, fc2.weight, fc2.bias)
    returns [B, 1] float32
    """
    w1_bf, b1w2, b2_sc = params
    B, d_in = x.shape
    H = w1_bf.shape[0]

    tb = _pick_batch_tile(B, max_batch_tile)
    grid = pl.cdiv(B, tb)   # ragged last tile handled by Pallas masked boundary

    out_row = pl.pallas_call(
        value_net_kernel,
        out_shape=jax.ShapeDtypeStruct((1, B), jnp.float32),
        grid_spec=pltpu.PrefetchScalarGridSpec(
            num_scalar_prefetch=0,
            grid=(grid,),
            in_specs=[
                pl.BlockSpec((tb, d_in), lambda i: (i, 0)),           # x: streamed f32
                pl.BlockSpec((H, d_in), lambda i: (0, 0)),            # W1: resident bf16
                pl.BlockSpec((H, 2), lambda i: (0, 0)),               # b1|w2: resident
                pl.BlockSpec(memory_space=pltpu.MemorySpace.SMEM),    # b2: scalar
            ],
            out_specs=pl.BlockSpec((1, tb), lambda i: (0, i)),
        ),
        compiler_params=pltpu.CompilerParams(
            dimension_semantics=("parallel",),                        # v7x: 2 TCs
        ),
    )(x, w1_bf, b1w2, b2_sc)

    return out_row.reshape(B, 1)


def reference_forward(x, w1, b1, w2, b2):
    # Mirrors kernel numerics: bf16 fc1 operands, f32 accumulation/epilogue.
    # (vs the true fp32 PyTorch module, the bf16 cast gives ~1e-2 rel deviation.)
    xb = x.astype(jnp.bfloat16).astype(jnp.float32)
    w1b = w1.astype(jnp.bfloat16).astype(jnp.float32)
    h = jnp.maximum(xb @ w1b.T + b1, 0.0)
    return h @ w2.T + b2


if __name__ == "__main__":
    # Small shapes implied by the module: input_size=32, hidden=64.
    D_IN, HIDDEN = 32, 64

    key = jax.random.PRNGKey(0)
    kx, kw1, kb1, kw2, kb2, kx2 = jax.random.split(key, 6)

    # Deterministic Linear-like init, in PyTorch weight layouts.
    lim1 = 1.0 / (D_IN ** 0.5)
    w1 = jax.random.uniform(kw1, (HIDDEN, D_IN), jnp.float32, -lim1, lim1)  # fc1.weight
    b1 = jax.random.uniform(kb1, (HIDDEN,), jnp.float32, -lim1, lim1)       # fc1.bias
    lim2 = 1.0 / (HIDDEN ** 0.5)
    w2 = jax.random.uniform(kw2, (1, HIDDEN), jnp.float32, -lim2, lim2)     # fc2.weight
    b2 = jax.random.uniform(kb2, (1,), jnp.float32, -lim2, lim2)            # fc2.bias

    params = prepare_params(w1, b1, w2, b2)

    # Small single-tile case (module-implied batch).
    B = 8
    x = jax.random.normal(kx, (B, D_IN), dtype=jnp.float32)
    out = jax.block_until_ready(value_network_forward(x, params))
    ref = reference_forward(x, w1, b1, w2, b2)
    assert out.shape == (B, 1)
    assert jnp.allclose(out, ref, atol=1e-4, rtol=1e-4), (out, ref)

    # Multi-step ragged case: exercises the >=2-parallel-step grid (v7x
    # megacore path) and the masked last input/output tile.
    B2 = 1000
    x2 = jax.random.normal(kx2, (B2, D_IN), dtype=jnp.float32)
    out2 = jax.block_until_ready(value_network_forward(x2, params))
    ref2 = reference_forward(x2, w1, b1, w2, b2)
    assert out2.shape == (B2, 1)
    assert jnp.allclose(out2, ref2, atol=1e-4, rtol=1e-4)

    print("KERNEL_OK")
</pallas_src>

<mosaic_0001>
module attributes {stable_mosaic.version = 11 : i64} {
  func.func @value_net_kernel(%arg0: i32, %arg1: memref<8x32xf32, #tpu.memory_space<vmem>>, %arg2: memref<64x32xbf16, #tpu.memory_space<vmem>>, %arg3: memref<64x2xf32, #tpu.memory_space<vmem>>, %arg4: memref<1x1xf32, #tpu.memory_space<smem>>, %arg5: memref<1x8xf32, #tpu.memory_space<vmem>>) attributes {dimension_semantics = [#tpu.dimension_semantics<parallel>], iteration_bounds = array<i64: 1>, scalar_prefetch = 0 : i64, scratch_operands = 0 : i64, tpu.core_type = #tpu.core_type<tc>, window_params = [{transform_indices = @transform_0, window_bounds = array<i64: 8, 32>}, {pipeline_mode = #tpu.pipeline_mode<synchronous>, transform_indices = @transform_1, window_bounds = array<i64: 64, 32>}, {pipeline_mode = #tpu.pipeline_mode<synchronous>, transform_indices = @transform_2, window_bounds = array<i64: 64, 2>}, {transform_indices = @transform_3, window_bounds = array<i64: 1, 1>}, {transform_indices = @transform_4, window_bounds = array<i64: 1, 8>}]} {
    %c0 = arith.constant 0 : index
    %c0_0 = arith.constant 0 : index
    %0 = vector.load %arg1[%c0, %c0_0] : memref<8x32xf32, #tpu.memory_space<vmem>>, vector<8x32xf32>
    %1 = arith.truncf %0 : vector<8x32xf32> to vector<8x32xbf16>
    %c0_1 = arith.constant 0 : index
    %c0_2 = arith.constant 0 : index
    %2 = vector.load %arg2[%c0_1, %c0_2] : memref<64x32xbf16, #tpu.memory_space<vmem>>, vector<64x32xbf16>
    %cst = arith.constant dense<0.000000e+00> : vector<64x8xf32>
    %3 = tpu.matmul %2, %1, %cst {dimension_numbers = #tpu.dot_dimension_numbers<[1], [1], [0], [0], [0, 0, 1, 0], [], []>} : vector<64x32xbf16>, vector<8x32xbf16>, vector<64x8xf32> -> vector<64x8xf32>
    %c0_3 = arith.constant 0 : index
    %c0_4 = arith.constant 0 : index
    %4 = vector.load %arg3[%c0_3, %c0_4] : memref<64x2xf32, #tpu.memory_space<vmem>>, vector<64x2xf32>
    %5 = vector.extract_strided_slice %4 {offsets = [0, 0], sizes = [64, 1], strides = [1, 1]} : vector<64x2xf32> to vector<64x1xf32>
    %6 = vector.extract_strided_slice %4 {offsets = [0, 1], sizes = [64, 1], strides = [1, 1]} : vector<64x2xf32> to vector<64x1xf32>
    %7 = vector.broadcast %5 : vector<64x1xf32> to vector<64x8xf32>
    %8 = arith.addf %3, %7 : vector<64x8xf32>
    %cst_5 = arith.constant 0.000000e+00 : f32
    %9 = vector.broadcast %cst_5 : f32 to vector<64x8xf32>
    %10 = arith.maximumf %8, %9 : vector<64x8xf32>
    %11 = vector.broadcast %6 : vector<64x1xf32> to vector<64x8xf32>
    %12 = arith.mulf %10, %11 : vector<64x8xf32>
    %cst_6 = arith.constant dense<0.000000e+00> : vector<8xf32>
    %13 = vector.multi_reduction <add>, %12, %cst_6 [0] : vector<64x8xf32> to vector<8xf32>
    %14 = vector.shape_cast %13 : vector<8xf32> to vector<1x8xf32>
    %c0_7 = arith.constant 0 : index
    %c0_8 = arith.constant 0 : index
    %15 = memref.load %arg4[%c0_7, %c0_8] : memref<1x1xf32, #tpu.memory_space<smem>>
    %16 = vector.broadcast %15 : f32 to vector<1x8xf32>
    %17 = arith.addf %14, %16 : vector<1x8xf32>
    %c0_9 = arith.constant 0 : index
    %c0_10 = arith.constant 0 : index
    %18 = vector.load %arg5[%c0_9, %c0_10] : memref<1x8xf32, #tpu.memory_space<vmem>>, vector<1x8xf32>
    tpu.vector_store %arg5[%c0_9, %c0_10], %17 {strides = array<i32>} : memref<1x8xf32, #tpu.memory_space<vmem>>, vector<1x8xf32>,
    return
  }
  func.func @transform_0(%arg0: i32) -> (i32, i32) {
    %c0_i32 = arith.constant 0 : i32
    %c0_i32_0 = arith.constant 0 : i32
    return %arg0, %c0_i32 : i32, i32
  }
  func.func @transform_1(%arg0: i32) -> (i32, i32) {
    %c0_i32 = arith.constant 0 : i32
    %c0_i32_0 = arith.constant 0 : i32
    %c0_i32_1 = arith.constant 0 : i32
    return %c0_i32, %c0_i32_0 : i32, i32
  }
  func.func @transform_2(%arg0: i32) -> (i32, i32) {
    %c0_i32 = arith.constant 0 : i32
    %c0_i32_0 = arith.constant 0 : i32
    %c0_i32_1 = arith.constant 0 : i32
    return %c0_i32, %c0_i32_0 : i32, i32
  }
  func.func @transform_3(%arg0: i32) -> (i32, i32) {
    %c0_i32 = arith.constant 0 : i32
    %c0_i32_0 = arith.constant 0 : i32
    %c0_i32_1 = arith.constant 0 : i32
    return %c0_i32, %c0_i32_0 : i32, i32
  }
  func.func @transform_4(%arg0: i32) -> (i32, i32) {
    %c0_i32 = arith.constant 0 : i32
    %c0_i32_0 = arith.constant 0 : i32
    return %c0_i32, %arg0 : i32, i32
  }
}

</mosaic_0001>

<llo_original>
// kernel: tpu_custom_call.1
$region0: #{tpu_custom_call.1}
  #allocation0 [shape = 'u32[]', space=smem, size = 0x4, offset = 0x4, fixed_abs, tag = 'smem constant byte address 0x4 - core index']
  #allocation1 [shape = 'u32[144,128]{1,0:T(1,128)}', space=vmem, size = 0x12000, scoped, tag = 'internal scratch']
  #allocation2 [shape = 'f32[1,1]{1,0:T(1,128)S(6)}', space=smem, size = 0x200, scoped, tag = 'scoped memory for tpu_custom_call.1']
  %s0 = inlined_call_operand.vmem [shape: f32[8,32], index: 0, kind: input, shape index: {}]
  %s1 = inlined_call_operand.vmem [shape: bf16[64,32], index: 1, kind: input, shape index: {}]
  %s2 = inlined_call_operand.vmem [shape: f32[64,2], index: 2, kind: input, shape index: {}]
  %s3 = inlined_call_operand.<no memory space> [shape: f32[1,1], index: 3, kind: input, shape index: {}]
  %s4 = inlined_call_operand.hbm [shape: f32[1,8], index: 4, kind: output, shape index: {}]
  %s5 = sld [smem:[#allocation0]]
  $region26: #{tpu_custom_call.1} parent=0
    _
  %s7 = ssub.s32 1, %s5
  %s8 = scalar_select 0, %s7, %s5
  %9 = sst [smem:[#allocation2]] %s3
  $region1: #{tpu_custom_call.1} parent=0
    #allocation3 [shape = 'u8[512]{0}', space=vmem, size = 0x400, scoped, tag = 'output window, operand 0, single buffered']
    #allocation4 [shape = 's32[1]{0}', space=sflag, size = 0x4, scoped, tag = 'scoped memory for tpu_custom_call.1']
    %10 = vsyncpa [#allocation4], 0
    // Predicated region
    $region2: #{tpu_custom_call.1} parent=1 // pred_check
      _
    $region3: #{tpu_custom_call.1} parent=1 // pred_check_branch
      %12 = sbr.rel (0) target = $region5
    $region4: #{tpu_custom_call.1} parent=1 // pred_region
      _
    $region5: #{tpu_custom_call.1} parent=1 // pred_fallthru
      _
    // Predicated region
    $region6: #{tpu_custom_call.1} parent=1 // pred_check
      _
    $region7: #{tpu_custom_call.1} parent=1 // pred_check_branch
      %14 = sbr.rel (0) target = $region9
    $region8: #{tpu_custom_call.1} parent=1 // pred_region
      _
    $region9: #{tpu_custom_call.1} parent=1 // pred_fallthru
      _
    // Predicated region
    $region10: #{tpu_custom_call.1} parent=1 // pred_check
      _
    $region11: #{tpu_custom_call.1} parent=1 // pred_check_branch
      %16 = sbr.rel (0) target = $region13
    $region12: #{tpu_custom_call.1} parent=1 // pred_region
      _
    $region13: #{tpu_custom_call.1} parent=1 // pred_fallthru
      _
    // Predicated region
    $region14: #{tpu_custom_call.1} parent=1 // pred_check
      _
    $region15: #{tpu_custom_call.1} parent=1 // pred_check_branch
      %18 = sbr.rel (0) target = $region17
    $region16: #{tpu_custom_call.1} parent=1 // pred_region
      _
    $region17: #{tpu_custom_call.1} parent=1 // pred_fallthru
      _
    %v20 = vld [vmem:[%s0] sm:$0xff]
    %v21 = vpack.c.bf16 %v20, %v20
    %v22 = vld [vmem:[%s1] sm:$0xf]
    %v23 = vld [vmem:[%s1 + $0x4] sm:$0xf]
    %v24 = vld [vmem:[%s1 + $0x8] sm:$0xf]
    %v25 = vld [vmem:[%s1 + $0xc] sm:$0xf]
    %v26 = vld [vmem:[%s1 + $0x10] sm:$0xf]
    %v27 = vld [vmem:[%s1 + $0x14] sm:$0xf]
    %v28 = vld [vmem:[%s1 + $0x18] sm:$0xf]
    %v29 = vld [vmem:[%s1 + $0x1c] sm:$0xf]
    %v30 = vld [vmem:[%s2] sm:$0xff]
    %v31 = vld [vmem:[%s2 + $0x8] sm:$0xff]
    %v32 = vld [vmem:[%s2 + $0x10] sm:$0xff]
    %v33 = vld [vmem:[%s2 + $0x18] sm:$0xff]
    %v34 = vld [vmem:[%s2 + $0x20] sm:$0xff]
    %v35 = vld [vmem:[%s2 + $0x28] sm:$0xff]
    %v36 = vld [vmem:[%s2 + $0x30] sm:$0xff]
    %v37 = vld [vmem:[%s2 + $0x38] sm:$0xff]
    %39 = vset.pattern.permute.xlu0 0
    %40 = vperm.xlu0 %39, %v30
    %v41 = vpop.permute.xlu0 %40
    %44 = vset.pattern.permute.xlu0 0
    %45 = vperm.xlu0 %44, %v31
    %v46 = vpop.permute.xlu0 %45
    %49 = vset.pattern.permute.xlu0 0
    %50 = vperm.xlu0 %49, %v32
    %v51 = vpop.permute.xlu0 %50
    %54 = vset.pattern.permute.xlu0 0
    %55 = vperm.xlu0 %54, %v33
    %v56 = vpop.permute.xlu0 %55
    %59 = vset.pattern.permute.xlu0 0
    %60 = vperm.xlu0 %59, %v34
    %v61 = vpop.permute.xlu0 %60
    %64 = vset.pattern.permute.xlu0 0
    %65 = vperm.xlu0 %64, %v35
    %v66 = vpop.permute.xlu0 %65
    %69 = vset.pattern.permute.xlu0 0
    %70 = vperm.xlu0 %69, %v36
    %v71 = vpop.permute.xlu0 %70
    %74 = vset.pattern.permute.xlu0 0
    %75 = vperm.xlu0 %74, %v37
    %v76 = vpop.permute.xlu0 %75
    %v86 = vunpack.c.l.b16 %v22
    %v87 = vunpack.c.l.b16 %v23
    %v88 = vunpack.c.l.b16 %v24
    %v89 = vunpack.c.l.b16 %v25
    %v90 = vunpack.c.l.b16 %v26
    %v91 = vunpack.c.l.b16 %v27
    %v92 = vunpack.c.l.b16 %v28
    %v93 = vunpack.c.l.b16 %v29
    %v94 = vpack.c.b16 %v87, %v86
    %v95 = vpack.c.b16 %v89, %v88
    %v96 = vpack.c.b16 %v91, %v90
    %v97 = vpack.c.b16 %v93, %v92
    %vm98 = vcmask 261120
    %v100 = vsel %vm98, %v94, 0
    %v103 = vsel %vm98, %v95, 0
    %v106 = vsel %vm98, %v96, 0
    %v109 = vsel %vm98, %v97, 0
    %v112 = vsel %vm98, %v21, 0
    %114 = vmatprep.subr.bf16.mxu0 0
    %115 = vmatpush1.bf16.xpose.msra.mxu0 %v112
    %116 = vmatprep.subr.bf16.mxu0 0
    %117 = vmatpush1.bf16.xpose.msra.mxu0 0
    %118 = vmatprep.subr.bf16.mxu0 0
    %119 = vmatpush1.bf16.xpose.msra.mxu0 0
    %120 = vmatprep.subr.bf16.mxu0 0
    %121 = vmatpush1.bf16.xpose.msra.mxu0 0
    %122 = vmatprep.subr.bf16.mxu0 0
    %123 = vmatpush1.bf16.xpose.msra.mxu0 0
    %124 = vmatprep.subr.bf16.mxu0 0
    %125 = vmatpush1.bf16.xpose.msra.mxu0 0
    %126 = vmatprep.subr.bf16.mxu0 0
    %127 = vmatpush1.bf16.xpose.msra.mxu0 0
    %128 = vmatprep.subr.bf16.mxu0 0
    %129 = vmatpush1.bf16.xpose.msra.mxu0 0
    %130 = vmatprep.subr.bf16.mxu0 0
    %131 = vmatpush1.bf16.xpose.msra.mxu0 0
    %132 = vmatprep.subr.bf16.mxu0 0
    %133 = vmatpush1.bf16.xpose.msra.mxu0 0
    %134 = vmatprep.subr.bf16.mxu0 0
    %135 = vmatpush1.bf16.xpose.msra.mxu0 0
    %136 = vmatprep.subr.bf16.mxu0 0
    %137 = vmatpush1.bf16.xpose.msra.mxu0 0
    %138 = vmatprep.subr.bf16.mxu0 0
    %139 = vmatpush1.bf16.xpose.msra.mxu0 0
    %140 = vmatprep.subr.bf16.mxu0 0
    %141 = vmatpush1.bf16.xpose.msra.mxu0 0
    %142 = vmatprep.subr.bf16.mxu0 0
    %143 = vmatpush1.bf16.xpose.msra.mxu0 0
    %144 = vmatprep.subr.bf16.mxu0 0
    %145 = vmatpush1.bf16.xpose.msra.mxu0 0
    %146 = vmatprep.mubr.bf16.mxu0 0
    %147 = vmatmul.mubr.bf16.gmra.mrb[0].mxu0 %v100
    %v148 = vpop.f32.mrb[0].mxu0
    %v149 = vadd.f32 %v41, %v148
    %v150 = vpop.f32.mrb[0].mxu0
    %v151 = vpop.f32.mrb[0].mxu0
    %v152 = vadd.f32 %v46, %v151
    %v153 = vpop.f32.mrb[0].mxu0
    %154 = vmatprep.mubr.bf16.mxu0 0
    %155 = vmatmul.mubr.bf16.gmra.mrb[0].mxu0 %v103
    %v156 = vpop.f32.mrb[0].mxu0
    %v157 = vadd.f32 %v51, %v156
    %v158 = vpop.f32.mrb[0].mxu0
    %v159 = vpop.f32.mrb[0].mxu0
    %v160 = vadd.f32 %v56, %v159
    %v161 = vpop.f32.mrb[0].mxu0
    %162 = vmatprep.mubr.bf16.mxu0 0
    %163 = vmatmul.mubr.bf16.gmra.mrb[0].mxu0 %v106
    %v164 = vpop.f32.mrb[0].mxu0
    %v165 = vadd.f32 %v61, %v164
    %v166 = vpop.f32.mrb[0].mxu0
    %v167 = vpop.f32.mrb[0].mxu0
    %v168 = vadd.f32 %v66, %v167
    %v169 = vpop.f32.mrb[0].mxu0
    %170 = vmatprep.mubr.bf16.mxu0 0
    %171 = vmatmul.mubr.bf16.gmra.mrb[0].mxu0 %v109
    %v172 = vpop.f32.mrb[0].mxu0
    %v173 = vadd.f32 %v71, %v172
    %v174 = vpop.f32.mrb[0].mxu0
    %v175 = vpop.f32.mrb[0].mxu0
    %v176 = vadd.f32 %v76, %v175
    %v177 = vpop.f32.mrb[0].mxu0
    %178 = vdwg.mxu0
    %v179 = vmax.f32 %v149, 0.0
    %v180 = vmax.f32 %v152, 0.0
    %v181 = vmax.f32 %v157, 0.0
    %v182 = vmax.f32 %v160, 0.0
    %v183 = vmax.f32 %v165, 0.0
    %v184 = vmax.f32 %v168, 0.0
    %v185 = vmax.f32 %v173, 0.0
    %v186 = vmax.f32 %v176, 0.0
    %187 = vset.pattern.permute.xlu0 1
    %188 = vperm.xlu0 %187, %v30
    %v189 = vpop.permute.xlu0 %188
    %191 = vset.pattern.permute.xlu0 1
    %192 = vperm.xlu0 %191, %v31
    %v193 = vpop.permute.xlu0 %192
    %195 = vset.pattern.permute.xlu0 1
    %196 = vperm.xlu0 %195, %v32
    %v197 = vpop.permute.xlu0 %196
    %199 = vset.pattern.permute.xlu0 1
    %200 = vperm.xlu0 %199, %v33
    %v201 = vpop.permute.xlu0 %200
    %203 = vset.pattern.permute.xlu0 1
    %204 = vperm.xlu0 %203, %v34
    %v205 = vpop.permute.xlu0 %204
    %207 = vset.pattern.permute.xlu0 1
    %208 = vperm.xlu0 %207, %v35
    %v209 = vpop.permute.xlu0 %208
    %211 = vset.pattern.permute.xlu0 1
    %212 = vperm.xlu0 %211, %v36
    %v213 = vpop.permute.xlu0 %212
    %215 = vset.pattern.permute.xlu0 1
    %216 = vperm.xlu0 %215, %v37
    %v217 = vpop.permute.xlu0 %216
    %v219 = vmul.f32 %v179, %v189
    %v220 = vmul.f32 %v180, %v193
    %v221 = vmul.f32 %v181, %v197
    %v222 = vmul.f32 %v182, %v201
    %v223 = vmul.f32 %v183, %v205
    %v224 = vmul.f32 %v184, %v209
    %v225 = vmul.f32 %v185, %v213
    %v226 = vmul.f32 %v186, %v217
    %vm227 = vcmask 64512
    %v228 = vsel %vm227, %v219, 0.0
    %v229 = vsel %vm227, %v220, 0.0
    %v230 = vadd.f32 %v228, %v229
    %v231 = vsel %vm227, %v221, 0.0
    %v232 = vadd.f32 %v230, %v231
    %v233 = vsel %vm227, %v222, 0.0
    %v234 = vadd.f32 %v232, %v233
    %v235 = vsel %vm227, %v223, 0.0
    %v236 = vadd.f32 %v234, %v235
    %v237 = vsel %vm227, %v224, 0.0
    %v238 = vadd.f32 %v236, %v237
    %v239 = vsel %vm227, %v225, 0.0
    %v240 = vadd.f32 %v238, %v239
    %v241 = vsel %vm227, %v226, 0.0
    %v242 = vadd.f32 %v240, %v241
    %v243 = vrot.slane %v242, 4
    %v244 = vadd.f32 %v242, %v243
    %v245 = vrot.slane %v244, 2
    %v246 = vadd.f32 %v244, %v245
    %v247 = vrot.slane %v246, 1
    %v248 = vadd.f32 %v246, %v247
    %s249 = sld [smem:[#allocation2]]
    %v250 = vstv %s249
    %v251 = vadd.f32 %v248, %v250
    %vm252 = vcmask 57344
    %253 = vst.msk [vmem:[#allocation3] sm:$0x1] %vm252, %v251
    // Predicated region
    $region18: #{tpu_custom_call.1} parent=1 // pred_check
      _
    $region19: #{tpu_custom_call.1} parent=1 // pred_check_branch
      %255 = sbr.rel (0) target = $region21
    $region20: #{tpu_custom_call.1} parent=1 // pred_region
      %s257 = ssub.s32 16, 16
      %258 = vsyncadd [#allocation4], %s257
      %s260 = sshll.u32 [#allocation3], 4
      %s261 = int_to_ptr.vmem [resolvable:$true] %s260
      %263 = dma.vmem_to_hbm [thread:$0]  %s261, 16, %s4, [#allocation4]
    $region21: #{tpu_custom_call.1} parent=1 // pred_fallthru
      _
    // Predicated region
    $region22: #{tpu_custom_call.1} parent=1 // pred_check
      _
    $region23: #{tpu_custom_call.1} parent=1 // pred_check_branch
      %265 = sbr.rel (0) target = $region25
    $region24: #{tpu_custom_call.1} parent=1 // pred_region
      %266 = dma.done [#allocation4], 16
    $region25: #{tpu_custom_call.1} parent=1 // pred_fallthru
      _
    %267 = vsyncpa [#allocation4], 1

</llo_original>
